<compile_context>
chip_gen: v5e
topology: v5e:2x2
jax: 0.10.0
libtpu: 0.0.40
codegen_flags: <defaults>
</compile_context>

<pallas_src>
import jax
import jax.numpy as jnp
from jax.experimental import pallas as pl
from jax.experimental.pallas import tpu as pltpu


BN_EPS = 1e-5
LANES = 128        # every feature dim padded to one full vreg lane width
SUBLANES = 8

# Row layout of the packed parameter slab [2*LANES + SUBLANES, LANES]:
_W0_ROWS = slice(0, LANES)                 # [128,128]  padded W0  (state -> h0)
_W1_ROWS = slice(LANES, 2 * LANES)         # [128,128]  padded W1  (concat -> h1)
_VEC0 = 2 * LANES                          # start of the 8 vector rows
(_R_B0, _R_GAMMA, _R_BETA, _R_B1,
 _R_W2, _R_B2, _R_AMASK) = range(7)        # rows inside the vec block


def critic_kernel(x_ref, p_ref, out_ref):
    """x_ref: packed (B,128) state+action tile; p_ref: (264,128) parameter slab."""
    B = x_ref.shape[0]

    w0 = p_ref[_W0_ROWS, :]                          # [128,128]
    w1 = p_ref[_W1_ROWS, :]                          # [128,128]
    vec = p_ref[_VEC0:_VEC0 + SUBLANES, :]           # [8,128] (one aligned row block)
    b0 = vec[_R_B0:_R_B0 + 1, :]
    gamma = vec[_R_GAMMA:_R_GAMMA + 1, :]
    beta = vec[_R_BETA:_R_BETA + 1, :]
    b1 = vec[_R_B1:_R_B1 + 1, :]
    w2r = vec[_R_W2:_R_W2 + 1, :]
    b2r = vec[_R_B2:_R_B2 + 1, :]                    # b2 broadcast across all lanes
    amask = vec[_R_AMASK:_R_AMASK + 1, :]            # 1.0 on action lanes, else 0.0

    x_in = x_ref[...]                                # state + action, packed

    # ---- input layer + ReLU --------------------------------------------------
    # W0 rows at action lanes are zero, so the packed action does not leak in.
    xs = jnp.dot(x_in, w0, preferred_element_type=jnp.float32) + b0
    xs = jnp.maximum(xs, 0.0)

    # ---- BatchNorm1d (training mode: batch stats, biased var), single pass ----
    # TODO(synk): assumes all B rows are real samples (no batch padding/masking).
    inv_b = 1.0 / B
    s1 = jnp.sum(xs, axis=0, keepdims=True)
    s2 = jnp.sum(xs * xs, axis=0, keepdims=True)
    mean = s1 * inv_b
    var = jnp.maximum(s2 * inv_b - mean * mean, 0.0)
    scale = gamma * jax.lax.rsqrt(var + BN_EPS)      # gamma=0 on padded lanes -> 0
    shift = beta - mean * scale
    xs = xs * scale + shift                          # padded lanes remain exactly 0

    # ---- concat folded in: pull action lanes back out of the packed input -----
    x_cat = xs + x_in * amask

    h = jnp.dot(x_cat, w1, preferred_element_type=jnp.float32) + b1
    h = jnp.maximum(h, 0.0)

    # ---- final Linear(h1, 1): VPU multiply + lane reduce (no N=1 MXU matmul) --
    val = jnp.sum(h * w2r, axis=-1, keepdims=True)               # [B,1]
    out = jnp.maximum(jnp.broadcast_to(val, out_ref.shape) + b2r, 0.0)
    out_ref[...] = out                                           # lane-dense store


def pack_params(params, state_size, action_size, hidden):
    """Pack raw (pre-transposed [in,out]) params into one f32 slab [264,128].

    Layout convention matched by critic_forward's input packing:
      * state occupies lanes [0 : state_size]
      * action occupies lanes [128-action_size : 128]
    """
    w0, b0, gamma, beta, w1, b1, w2, b2 = params
    h0, h1 = hidden
    a_lo = LANES - action_size
    assert state_size <= a_lo, "state and action lane ranges must not overlap"
    assert h0 + action_size <= LANES and h1 <= LANES

    w0_p = jnp.zeros((LANES, LANES), jnp.float32).at[:state_size, :h0].set(w0)
    # W1: xs rows at [0:h0], action rows at the top lanes.
    w1_p = (jnp.zeros((LANES, LANES), jnp.float32)
            .at[:h0, :h1].set(w1[:h0])
            .at[a_lo:, :h1].set(w1[h0:h0 + action_size]))

    vec = jnp.zeros((SUBLANES, LANES), jnp.float32)
    vec = vec.at[_R_B0, :h0].set(b0)
    vec = vec.at[_R_GAMMA, :h0].set(gamma)           # padded lanes stay 0 on purpose
    vec = vec.at[_R_BETA, :h0].set(beta)
    vec = vec.at[_R_B1, :h1].set(b1)
    vec = vec.at[_R_W2, :h1].set(w2[:, 0])
    vec = vec.at[_R_B2, :].set(b2[0])                # scalar broadcast over the row
    vec = vec.at[_R_AMASK, a_lo:].set(1.0)           # action-lane mask

    return jnp.concatenate([w0_p, w1_p, vec], axis=0)   # [264, 128]


@jax.jit
def critic_forward(state, action, slab):
    B, state_size = state.shape
    action_size = action.shape[1]
    assert B % SUBLANES == 0, "batch must be a multiple of 8 (sublane aligned)"
    a_lo = LANES - action_size
    assert state_size <= a_lo, "state and action lane ranges must not overlap"

    # ONE packed lane-dense input: state at low lanes, action at the top lanes.
    x_in = (jnp.zeros((B, LANES), jnp.float32)
            .at[:, :state_size].set(state)
            .at[:, a_lo:].set(action))

    flops = 2 * (2 * B * LANES * LANES) + 16 * B * LANES        # 2 matmuls + VPU work
    bytes_accessed = 4 * (B * LANES + slab.size + B * LANES)
    vmem = pl.BlockSpec(memory_space=pltpu.MemorySpace.VMEM)

    # Grid-less: whole problem fits in a fraction of one VMEM tile budget.
    # TODO(synk): for large B on v7x, add a grid over B with
    # dimension_semantics=("parallel",) and move BN stats to a separate pass.
    out_full = pl.pallas_call(
        critic_kernel,
        out_shape=jax.ShapeDtypeStruct((B, LANES), jnp.float32),
        in_specs=[vmem, vmem],
        out_specs=vmem,
        cost_estimate=pl.CostEstimate(flops=flops, transcendentals=LANES,
                                      bytes_accessed=bytes_accessed),
    )(x_in, slab)
    return out_full[:, :1]                                       # (B, 1)


def init_params(key, state_size, action_size, hidden):
    """Deterministic init mirroring Critic.__init__ / reset_parameters shapes."""
    h0, h1 = hidden
    ks = jax.random.split(key, 6)

    def uniform(k, shape, lim):
        return jax.random.uniform(k, shape, jnp.float32, -lim, lim)

    w0 = uniform(ks[0], (state_size, h0), 1.0 / jnp.sqrt(float(h0)))       # [in,out]
    b0 = uniform(ks[1], (h0,), 1.0 / jnp.sqrt(float(state_size)))
    gamma = jnp.ones((h0,), jnp.float32)                                   # BN affine
    beta = jnp.zeros((h0,), jnp.float32)
    w1 = uniform(ks[2], (h0 + action_size, h1), 1.0 / jnp.sqrt(float(h1)))
    b1 = uniform(ks[3], (h1,), 1.0 / jnp.sqrt(float(h0 + action_size)))
    w2 = uniform(ks[4], (h1, 1), 3e-3)
    b2 = uniform(ks[5], (1,), 1.0 / jnp.sqrt(float(h1)))
    return (w0, b0, gamma, beta, w1, b1, w2, b2)


def critic_reference(state, action, params):
    """Plain-JAX reference of the same forward pass (sanity check)."""
    w0, b0, gamma, beta, w1, b1, w2, b2 = params
    xs = jnp.maximum(state @ w0 + b0, 0.0)
    mean = jnp.mean(xs, axis=0, keepdims=True)
    var = jnp.mean((xs - mean) ** 2, axis=0, keepdims=True)
    xs = (xs - mean) / jnp.sqrt(var + BN_EPS) * gamma + beta
    x = jnp.concatenate([xs, action], axis=1)
    h = jnp.maximum(x @ w1 + b1, 0.0)
    return jnp.maximum(h @ w2 + b2, 0.0)


if __name__ == "__main__":
    # Shapes consistent with Critic(state_size=16, action_size=4, hidden=(32,32), seed=0)
    # applied to a batch of 8.
    B, STATE, ACTION, HIDDEN = 8, 16, 4, (32, 32)

    key = jax.random.PRNGKey(0)
    k_state, k_action, k_params = jax.random.split(key, 3)
    state = jax.random.normal(k_state, (B, STATE), jnp.float32)
    action = jax.random.normal(k_action, (B, ACTION), jnp.float32)
    params = init_params(k_params, STATE, ACTION, HIDDEN)
    slab = pack_params(params, STATE, ACTION, HIDDEN)

    out = critic_forward(state, action, slab)
    out = jax.block_until_ready(out)

    ref = critic_reference(state, action, params)
    assert out.shape == (B, 1), out.shape
    assert jnp.allclose(out, ref, atol=2e-5, rtol=1e-4), (out, ref)

    print("KERNEL_OK")
</pallas_src>

<mosaic_0001>
module attributes {stable_mosaic.version = 11 : i64} {
  func.func @critic_kernel(%arg0: memref<8x128xf32, #tpu.memory_space<vmem>>, %arg1: memref<264x128xf32, #tpu.memory_space<vmem>>, %arg2: memref<8x128xf32, #tpu.memory_space<vmem>>) attributes {dimension_semantics = [], scalar_prefetch = 0 : i64, scratch_operands = 0 : i64, tpu.core_type = #tpu.core_type<tc>} {
    %c0 = arith.constant 0 : index
    %c0_0 = arith.constant 0 : index
    %0 = vector.load %arg1[%c0, %c0_0] : memref<264x128xf32, #tpu.memory_space<vmem>>, vector<128x128xf32>
    %c128 = arith.constant 128 : index
    %c0_1 = arith.constant 0 : index
    %1 = vector.load %arg1[%c128, %c0_1] : memref<264x128xf32, #tpu.memory_space<vmem>>, vector<128x128xf32>
    %c256 = arith.constant 256 : index
    %c0_2 = arith.constant 0 : index
    %2 = vector.load %arg1[%c256, %c0_2] : memref<264x128xf32, #tpu.memory_space<vmem>>, vector<8x128xf32>
    %3 = vector.extract_strided_slice %2 {offsets = [0, 0], sizes = [1, 128], strides = [1, 1]} : vector<8x128xf32> to vector<1x128xf32>
    %4 = vector.extract_strided_slice %2 {offsets = [1, 0], sizes = [1, 128], strides = [1, 1]} : vector<8x128xf32> to vector<1x128xf32>
    %5 = vector.extract_strided_slice %2 {offsets = [2, 0], sizes = [1, 128], strides = [1, 1]} : vector<8x128xf32> to vector<1x128xf32>
    %6 = vector.extract_strided_slice %2 {offsets = [3, 0], sizes = [1, 128], strides = [1, 1]} : vector<8x128xf32> to vector<1x128xf32>
    %7 = vector.extract_strided_slice %2 {offsets = [4, 0], sizes = [1, 128], strides = [1, 1]} : vector<8x128xf32> to vector<1x128xf32>
    %8 = vector.extract_strided_slice %2 {offsets = [5, 0], sizes = [1, 128], strides = [1, 1]} : vector<8x128xf32> to vector<1x128xf32>
    %9 = vector.extract_strided_slice %2 {offsets = [6, 0], sizes = [1, 128], strides = [1, 1]} : vector<8x128xf32> to vector<1x128xf32>
    %c0_3 = arith.constant 0 : index
    %c0_4 = arith.constant 0 : index
    %10 = vector.load %arg0[%c0_3, %c0_4] : memref<8x128xf32, #tpu.memory_space<vmem>>, vector<8x128xf32>
    %cst = arith.constant dense<0.000000e+00> : vector<8x128xf32>
    %11 = tpu.matmul %10, %0, %cst {dimension_numbers = #tpu.dot_dimension_numbers<[1], [0], [0], [1], [0, 0, 1, 1], [], []>} : vector<8x128xf32>, vector<128x128xf32>, vector<8x128xf32> -> vector<8x128xf32>
    %12 = vector.broadcast %3 : vector<1x128xf32> to vector<8x128xf32>
    %13 = arith.addf %11, %12 : vector<8x128xf32>
    %cst_5 = arith.constant 0.000000e+00 : f32
    %14 = vector.broadcast %cst_5 : f32 to vector<8x128xf32>
    %15 = arith.maximumf %13, %14 : vector<8x128xf32>
    %cst_6 = arith.constant dense<0.000000e+00> : vector<128xf32>
    %16 = vector.multi_reduction <add>, %15, %cst_6 [0] : vector<8x128xf32> to vector<128xf32>
    %17 = vector.shape_cast %16 : vector<128xf32> to vector<1x128xf32>
    %18 = arith.mulf %15, %15 : vector<8x128xf32>
    %cst_7 = arith.constant dense<0.000000e+00> : vector<128xf32>
    %19 = vector.multi_reduction <add>, %18, %cst_7 [0] : vector<8x128xf32> to vector<128xf32>
    %20 = vector.shape_cast %19 : vector<128xf32> to vector<1x128xf32>
    %cst_8 = arith.constant 1.250000e-01 : f32
    %21 = vector.broadcast %cst_8 : f32 to vector<1x128xf32>
    %22 = arith.mulf %17, %21 : vector<1x128xf32>
    %cst_9 = arith.constant 1.250000e-01 : f32
    %23 = vector.broadcast %cst_9 : f32 to vector<1x128xf32>
    %24 = arith.mulf %20, %23 : vector<1x128xf32>
    %25 = arith.mulf %22, %22 : vector<1x128xf32>
    %26 = arith.subf %24, %25 : vector<1x128xf32>
    %cst_10 = arith.constant 0.000000e+00 : f32
    %27 = vector.broadcast %cst_10 : f32 to vector<1x128xf32>
    %28 = arith.maximumf %26, %27 : vector<1x128xf32>
    %cst_11 = arith.constant 9.99999974E-6 : f32
    %29 = vector.broadcast %cst_11 : f32 to vector<1x128xf32>
    %30 = arith.addf %28, %29 : vector<1x128xf32>
    %31 = math.rsqrt %30 : vector<1x128xf32>
    %32 = arith.mulf %4, %31 : vector<1x128xf32>
    %33 = arith.mulf %22, %32 : vector<1x128xf32>
    %34 = arith.subf %5, %33 : vector<1x128xf32>
    %35 = vector.broadcast %32 : vector<1x128xf32> to vector<8x128xf32>
    %36 = arith.mulf %15, %35 : vector<8x128xf32>
    %37 = vector.broadcast %34 : vector<1x128xf32> to vector<8x128xf32>
    %38 = arith.addf %36, %37 : vector<8x128xf32>
    %39 = vector.broadcast %9 : vector<1x128xf32> to vector<8x128xf32>
    %40 = arith.mulf %10, %39 : vector<8x128xf32>
    %41 = arith.addf %38, %40 : vector<8x128xf32>
    %cst_12 = arith.constant dense<0.000000e+00> : vector<8x128xf32>
    %42 = tpu.matmul %41, %1, %cst_12 {dimension_numbers = #tpu.dot_dimension_numbers<[1], [0], [0], [1], [0, 0, 1, 1], [], []>} : vector<8x128xf32>, vector<128x128xf32>, vector<8x128xf32> -> vector<8x128xf32>
    %43 = vector.broadcast %6 : vector<1x128xf32> to vector<8x128xf32>
    %44 = arith.addf %42, %43 : vector<8x128xf32>
    %cst_13 = arith.constant 0.000000e+00 : f32
    %45 = vector.broadcast %cst_13 : f32 to vector<8x128xf32>
    %46 = arith.maximumf %44, %45 : vector<8x128xf32>
    %47 = vector.broadcast %7 : vector<1x128xf32> to vector<8x128xf32>
    %48 = arith.mulf %46, %47 : vector<8x128xf32>
    %cst_14 = arith.constant dense<0.000000e+00> : vector<8xf32>
    %49 = vector.multi_reduction <add>, %48, %cst_14 [1] : vector<8x128xf32> to vector<8xf32>
    %50 = vector.shape_cast %49 : vector<8xf32> to vector<8x1xf32>
    %51 = vector.shape_cast %50 : vector<8x1xf32> to vector<8x1xf32>
    %52 = vector.broadcast %51 : vector<8x1xf32> to vector<8x128xf32>
    %53 = vector.broadcast %8 : vector<1x128xf32> to vector<8x128xf32>
    %54 = arith.addf %52, %53 : vector<8x128xf32>
    %cst_15 = arith.constant 0.000000e+00 : f32
    %55 = vector.broadcast %cst_15 : f32 to vector<8x128xf32>
    %56 = arith.maximumf %54, %55 : vector<8x128xf32>
    %c0_16 = arith.constant 0 : index
    %c0_17 = arith.constant 0 : index
    %57 = vector.load %arg2[%c0_16, %c0_17] : memref<8x128xf32, #tpu.memory_space<vmem>>, vector<8x128xf32>
    tpu.vector_store %arg2[%c0_16, %c0_17], %56 {strides = array<i32>} : memref<8x128xf32, #tpu.memory_space<vmem>>, vector<8x128xf32>,
    return
  }
}

</mosaic_0001>

<llo_original>
// kernel: critic_forward.1
$region0: #{critic_forward.1}
  #allocation0 [shape = 'u32[]', space=smem, size = 0x4, offset = 0x4, fixed_abs, tag = 'smem constant byte address 0x4 - core index']
  #allocation1 [shape = 'u32[72,128]{1,0:T(1,128)}', space=vmem, size = 0x9000, scoped, tag = 'internal scratch']
  %s0 = inlined_call_operand.vmem [shape: f32[8,128], index: 0, kind: input, shape index: {}]
  %s1 = inlined_call_operand.hbm [shape: f32[264,128], index: 1, kind: input, shape index: {}]
  %s2 = inlined_call_operand.vmem [shape: f32[8,128], index: 2, kind: output, shape index: {}]
  %s3 = sld [smem:[#allocation0]]
  $region22: #{critic_forward.1} parent=0
    _
  %s5 = ssub.s32 1, %s3
  %s6 = scalar_select 0, %s5, %s3
  $region1: #{critic_forward.1} parent=0
    #allocation2 [shape = 'u8[135168]{0}', space=vmem, size = 0x21000, scoped, tag = 'input window, operand 1, single buffered']
    #allocation3 [shape = 's32[1]{0}', space=sflag, size = 0x4, scoped, tag = 'scoped memory for critic_forward.1']
    %7 = vsyncpa [#allocation3], 0
    // Predicated region
    $region2: #{critic_forward.1} parent=1 // pred_check
      _
    $region3: #{critic_forward.1} parent=1 // pred_check_branch
      %9 = sbr.rel (0) target = $region5
    $region4: #{critic_forward.1} parent=1 // pred_region
      _
    $region5: #{critic_forward.1} parent=1 // pred_fallthru
      _
    // Predicated region
    $region6: #{critic_forward.1} parent=1 // pred_check
      _
    $region7: #{critic_forward.1} parent=1 // pred_check_branch
      %11 = sbr.rel (0) target = $region9
    $region8: #{critic_forward.1} parent=1 // pred_region
      %13 = vsyncadd [#allocation3], 0
      %s14 = sshll.u32 %s1, 4
      %s15 = int_to_ptr.hbm [resolvable:$true] %s14
      %s16 = sshll.u32 [#allocation2], 4
      %s17 = int_to_ptr.vmem [resolvable:$true] %s16
      %22 = dma.hbm_to_vmem [thread:$0]  %s15, 4224, %s17, [#allocation3], 128, 128, 8
    $region9: #{critic_forward.1} parent=1 // pred_fallthru
      _
    // Predicated region
    $region10: #{critic_forward.1} parent=1 // pred_check
      _
    $region11: #{critic_forward.1} parent=1 // pred_check_branch
      %24 = sbr.rel (0) target = $region13
    $region12: #{critic_forward.1} parent=1 // pred_region
      %26 = dma.done [#allocation3], 4224
    $region13: #{critic_forward.1} parent=1 // pred_fallthru
      _
    %v27 = vld [vmem:[#allocation2] sm:$0xff]
    %v28 = vld [vmem:[#allocation2 + $0x8] sm:$0xff]
    %v29 = vld [vmem:[#allocation2 + $0x10] sm:$0xff]
    %v30 = vld [vmem:[#allocation2 + $0x18] sm:$0xff]
    %v31 = vld [vmem:[#allocation2 + $0x20] sm:$0xff]
    %v32 = vld [vmem:[#allocation2 + $0x28] sm:$0xff]
    %v33 = vld [vmem:[#allocation2 + $0x30] sm:$0xff]
    %v34 = vld [vmem:[#allocation2 + $0x38] sm:$0xff]
    %v35 = vld [vmem:[#allocation2 + $0x40] sm:$0xff]
    %v36 = vld [vmem:[#allocation2 + $0x48] sm:$0xff]
    %v37 = vld [vmem:[#allocation2 + $0x50] sm:$0xff]
    %v38 = vld [vmem:[#allocation2 + $0x58] sm:$0xff]
    %v39 = vld [vmem:[#allocation2 + $0x60] sm:$0xff]
    %v40 = vld [vmem:[#allocation2 + $0x68] sm:$0xff]
    %v41 = vld [vmem:[#allocation2 + $0x70] sm:$0xff]
    %v42 = vld [vmem:[#allocation2 + $0x78] sm:$0xff]
    %v43 = vld [vmem:[#allocation2 + $0x80] sm:$0xff]
    %v44 = vld [vmem:[#allocation2 + $0x88] sm:$0xff]
    %v45 = vld [vmem:[#allocation2 + $0x90] sm:$0xff]
    %v46 = vld [vmem:[#allocation2 + $0x98] sm:$0xff]
    %v47 = vld [vmem:[#allocation2 + $0xa0] sm:$0xff]
    %v48 = vld [vmem:[#allocation2 + $0xa8] sm:$0xff]
    %v49 = vld [vmem:[#allocation2 + $0xb0] sm:$0xff]
    %v50 = vld [vmem:[#allocation2 + $0xb8] sm:$0xff]
    %v51 = vld [vmem:[#allocation2 + $0xc0] sm:$0xff]
    %v52 = vld [vmem:[#allocation2 + $0xc8] sm:$0xff]
    %v53 = vld [vmem:[#allocation2 + $0xd0] sm:$0xff]
    %v54 = vld [vmem:[#allocation2 + $0xd8] sm:$0xff]
    %v55 = vld [vmem:[#allocation2 + $0xe0] sm:$0xff]
    %v56 = vld [vmem:[#allocation2 + $0xe8] sm:$0xff]
    %v57 = vld [vmem:[#allocation2 + $0xf0] sm:$0xff]
    %v58 = vld [vmem:[#allocation2 + $0xf8] sm:$0xff]
    %v59 = vld [vmem:[#allocation2 + $0x100] sm:$0xff]
    %v60 = vld [vmem:[%s0] sm:$0xff]
    %v61 = vperm.slane %v59, 0
    %62 = vmatpush.msra.mxu0 %v42
    %63 = vmatpush.msra.mxu0 %v41
    %64 = vmatpush.msra.mxu0 %v40
    %65 = vmatpush.msra.mxu0 %v39
    %66 = vmatpush.msra.mxu0 %v38
    %67 = vmatpush.msra.mxu0 %v37
    %68 = vmatpush.msra.mxu0 %v36
    %69 = vmatpush.msra.mxu0 %v35
    %70 = vmatpush.msra.mxu0 %v34
    %71 = vmatpush.msra.mxu0 %v33
    %72 = vmatpush.msra.mxu0 %v32
    %73 = vmatpush.msra.mxu0 %v31
    %74 = vmatpush.msra.mxu0 %v30
    %75 = vmatpush.msra.mxu0 %v29
    %76 = vmatpush.msra.mxu0 %v28
    %77 = vmatpush.msra.mxu0 %v27
    %78 = vmatmul.f32.gmra.mxu0 %v60
    %v79 = vpop.f32.mrf.mxu0
    %v80 = vadd.f32 %v61, %v79
    %81 = vdwg.mxu0
    %v82 = vmax.f32 %v80, 0.0
    %v83 = vrot.slane %v82, 4
    %v84 = vadd.f32 %v82, %v83
    %v85 = vrot.slane %v84, 2
    %v86 = vadd.f32 %v84, %v85
    %v87 = vrot.slane %v86, 1
    %v88 = vadd.f32 %v86, %v87
    %v89 = vmul.f32 %v82, %v82
    %v90 = vrot.slane %v89, 4
    %v91 = vadd.f32 %v89, %v90
    %v92 = vrot.slane %v91, 2
    %v93 = vadd.f32 %v91, %v92
    %v94 = vrot.slane %v93, 1
    %v95 = vadd.f32 %v93, %v94
    %v96 = vmul.f32 %v88, 0.125
    %v97 = vmul.f32 %v95, 0.125
    %v98 = vmul.f32 %v96, %v96
    %v99 = vsub.f32 %v97, %v98
    %v100 = vmax.f32 %v99, 0.0
    %v101 = vadd.f32 %v100, 1e-05
    %v102 = vrsqrt.pop %v101
    %v103 = vmul.f32 %v102, %v101
    %v104 = vmul.f32 %v103, %v102
    %v105 = vmul.f32 0.5, %v104
    %v106 = vsub.f32 1.5, %v105
    %v107 = vmul.f32 %v102, %v106
    %vm108 = vweird.f32 %v101
    %vm109 = vweird.f32 %v102
    %vm110 = vmor %vm108, %vm109
    %v111 = vsel %vm110, %v102, %v107
    %v112 = vmul.f32 %v59, %v111
    %v113 = vmul.f32 %v96, %v112
    %v115 = vrot.slane %v113, 7
    %v117 = vsub.f32 %v59, %v115
    %v118 = vperm.slane %v112, 1
    %v119 = vmul.f32 %v82, %v118
    %v120 = vperm.slane %v117, 2
    %v121 = vadd.f32 %v119, %v120
    %v122 = vperm.slane %v59, 6
    %v123 = vmul.f32 %v60, %v122
    %v124 = vadd.f32 %v121, %v123
    %v125 = vperm.slane %v59, 3
    %126 = vmatpush.msra.mxu0 %v58
    %127 = vmatpush.msra.mxu0 %v57
    %128 = vmatpush.msra.mxu0 %v56
    %129 = vmatpush.msra.mxu0 %v55
    %130 = vmatpush.msra.mxu0 %v54
    %131 = vmatpush.msra.mxu0 %v53
    %132 = vmatpush.msra.mxu0 %v52
    %133 = vmatpush.msra.mxu0 %v51
    %134 = vmatpush.msra.mxu0 %v50
    %135 = vmatpush.msra.mxu0 %v49
    %136 = vmatpush.msra.mxu0 %v48
    %137 = vmatpush.msra.mxu0 %v47
    %138 = vmatpush.msra.mxu0 %v46
    %139 = vmatpush.msra.mxu0 %v45
    %140 = vmatpush.msra.mxu0 %v44
    %141 = vmatpush.msra.mxu0 %v43
    %142 = vmatmul.f32.gmra.mxu0 %v124
    %v143 = vpop.f32.mrf.mxu0
    %v144 = vadd.f32 %v125, %v143
    %145 = vdwg.mxu0
    %v146 = vmax.f32 %v144, 0.0
    %v147 = vperm.slane %v59, 4
    %v148 = vmul.f32 %v146, %v147
    %149 = vadd.xlane.f32.xlu0 %v148
    %v150 = vpop.xlane.xlu0 %149
    %v151 = vperm.slane %v59, 5
    %v152 = vadd.f32 %v150, %v151
    %v153 = vmax.f32 %v152, 0.0
    %154 = vst [vmem:[%s2] sm:$0xff] %v153
    // Predicated region
    $region14: #{critic_forward.1} parent=1 // pred_check
      _
    $region15: #{critic_forward.1} parent=1 // pred_check_branch
      %156 = sbr.rel (0) target = $region17
    $region16: #{critic_forward.1} parent=1 // pred_region
      _
    $region17: #{critic_forward.1} parent=1 // pred_fallthru
      _
    // Predicated region
    $region18: #{critic_forward.1} parent=1 // pred_check
      _
    $region19: #{critic_forward.1} parent=1 // pred_check_branch
      %158 = sbr.rel (0) target = $region21
    $region20: #{critic_forward.1} parent=1 // pred_region
      _
    $region21: #{critic_forward.1} parent=1 // pred_fallthru
      _
    %159 = vsyncpa [#allocation3], 1

</llo_original>
